<compile_context>
chip_gen: v7x
topology: tpu7x:2x2x1
jax: 0.10.0
libtpu: 0.0.40
codegen_flags: <defaults>
</compile_context>

<pallas_src>
import jax
import jax.numpy as jnp
from jax.experimental import pallas as pl
from jax.experimental.pallas import tpu as pltpu

LN_EPS = 1e-5  # nn.LayerNorm default


def prenorm_kernel(x_ref, gamma_ref, beta_ref, w_ref, b_ref, o_ref):
    # x_ref: (tile_m, D) rows of tokens; LayerNorm reduces over D (lane axis).
    x = x_ref[...].astype(jnp.float32)
    inv_d = 1.0 / x.shape[-1]

    # Two-pass LayerNorm: subtract the mean before squaring (matches
    # nn.LayerNorm precision; avoids catastrophic cancellation).
    mean = jnp.sum(x, axis=-1, keepdims=True) * inv_d          # XLU reduce
    xc = x - mean
    var = jnp.sum(xc * xc, axis=-1, keepdims=True) * inv_d     # XLU reduce
    inv_std = jax.lax.rsqrt(var + LN_EPS)                      # EUP

    g = gamma_ref[...].astype(jnp.float32)                     # hoisted once per tile
    bt = beta_ref[...].astype(jnp.float32)
    y = xc * inv_std * g + bt

    # fn(x): Linear(dim, dim) on the MXU.  Operands in the weight dtype
    # (bf16 by default); f32 accumulation.
    out = jnp.dot(y.astype(w_ref.dtype), w_ref[...],
                  preferred_element_type=jnp.float32)
    out = out + b_ref[...].astype(jnp.float32)
    o_ref[...] = out.astype(o_ref.dtype)


def _round_up(a, b):
    return ((a + b - 1) // b) * b


def _round_down(a, b):
    return (a // b) * b


def prenorm_linear(x, gamma, beta, w, b, *, tile_m=None,
                   mxu_dtype=jnp.bfloat16, out_dtype=None,
                   vmem_budget_bytes=40 * 1024 * 1024):
    """x: (B, N, D) -> (B, N, D).  LayerNorm over D, then x @ w + b."""
    B, N, D = x.shape
    M = B * N
    x2 = x.reshape(M, D)
    out_dtype = x.dtype if out_dtype is None else out_dtype

    w_c = w if mxu_dtype is None else w.astype(mxu_dtype)
    gamma2 = gamma.reshape(1, D)
    beta2 = beta.reshape(1, D)
    b2 = b.reshape(1, D)

    in_bytes = x.dtype.itemsize
    out_bytes = jnp.dtype(out_dtype).itemsize
    w_bytes = w_c.dtype.itemsize

    # Sublane granularity for the row tile: 8 (f32), 16 (bf16), 32 (int8).
    sublane = max(8, 32 // in_bytes)

    # Physical VMEM of the current generation (128 MiB v5e/v6e, 64 MiB v7x).
    try:
        vmem_cap = int(pltpu.get_tpu_info().vmem_capacity_bytes)
    except Exception:
        vmem_cap = 64 << 20  # conservative (v7x) fallback

    budget = min(vmem_budget_bytes, int(0.62 * vmem_cap))

    # Per-grid-step footprint:
    #  * double-buffered pipeline buffers for the x tile and the out tile,
    #  * in-kernel f32 temporaries (x_f32, centered/normalized y, f32 matmul
    #    accumulator) ~= 3 * D * 4 bytes per row.
    per_row_bytes = 2 * D * (in_bytes + out_bytes) + 3 * D * 4
    # Grid-invariant operands (double-buffered by the default pipeline) plus
    # their small in-kernel f32 casts.
    fixed_bytes = 2 * (D * D * w_bytes + 3 * D * 4) + 4 * D * 4

    if tile_m is None:
        # Grow the row tile as far as the budget allows (amortizes the
        # ~0.35 us per-step overhead); cap at 8192 rows.
        tile_m = _round_down(max(budget - fixed_bytes, 0) // per_row_bytes,
                             sublane)
        tile_m = max(sublane, min(tile_m, 8192))
    # Never use a block taller than the (sublane-rounded) row count.
    tile_m = min(tile_m, _round_up(M, sublane))
    tile_m = max(sublane, _round_up(tile_m, sublane))

    footprint = fixed_bytes + tile_m * per_row_bytes
    vmem_limit = int(1.25 * footprint) + (4 << 20)
    vmem_limit = min(max(vmem_limit, 32 << 20), 100 << 20,
                     int(0.85 * vmem_cap))

    # Partial edge block is handled by Pallas (OOB reads padded, writes
    # masked); LN never reduces across rows, so this is safe.
    grid = (pl.cdiv(M, tile_m),)

    out = pl.pallas_call(
        prenorm_kernel,
        out_shape=jax.ShapeDtypeStruct((M, D), out_dtype),
        grid_spec=pltpu.PrefetchScalarGridSpec(
            num_scalar_prefetch=0,
            grid=grid,
            in_specs=[
                pl.BlockSpec((tile_m, D), lambda i: (i, 0)),   # x rows
                pl.BlockSpec((1, D), lambda i: (0, 0)),        # LN weight
                pl.BlockSpec((1, D), lambda i: (0, 0)),        # LN bias
                pl.BlockSpec((D, D), lambda i: (0, 0)),        # linear weight
                pl.BlockSpec((1, D), lambda i: (0, 0)),        # linear bias
            ],
            out_specs=pl.BlockSpec((tile_m, D), lambda i: (i, 0)),
        ),
        compiler_params=pltpu.CompilerParams(
            dimension_semantics=("parallel",),
            vmem_limit_bytes=vmem_limit),
    )(x2, gamma2, beta2, w_c, b2)

    return out.reshape(B, N, D)


def prenorm_reference(x, gamma, beta, w, b):
    xf = x.astype(jnp.float32)
    mean = jnp.mean(xf, axis=-1, keepdims=True)
    var = jnp.mean((xf - mean) ** 2, axis=-1, keepdims=True)
    y = (xf - mean) * jax.lax.rsqrt(var + LN_EPS)
    y = y * gamma + beta
    return (y @ w + b).astype(x.dtype)


if __name__ == "__main__":
    batch, seq, dim = 2, 8, 128   # dim multiple of 128 -> lane-dense output

    key = jax.random.PRNGKey(0)
    kx, kw, kb, kx2 = jax.random.split(key, 4)

    x = jax.random.normal(kx, (batch, seq, dim), dtype=jnp.float32)

    # nn.LayerNorm(dim) params: weight=ones, bias=zeros (default init).
    gamma = jnp.ones((dim,), dtype=jnp.float32)
    beta = jnp.zeros((dim,), dtype=jnp.float32)

    # fn = Linear(dim, dim): deterministic synthetic params.
    w = jax.random.normal(kw, (dim, dim), dtype=jnp.float32) * 0.05
    b = jax.random.normal(kb, (dim,), dtype=jnp.float32) * 0.01

    ref = prenorm_reference(x, gamma, beta, w, b)

    # 1) Strict f32 MXU path — tight tolerance against the pure-JAX reference.
    out_f32 = jax.block_until_ready(
        prenorm_linear(x, gamma, beta, w, b, mxu_dtype=None))
    assert out_f32.shape == (batch, seq, dim)
    assert jnp.allclose(out_f32, ref, atol=1e-4, rtol=1e-4)

    # 2) Default perf path (bf16 MXU operands, f32 accumulation).
    out_bf16 = jax.block_until_ready(prenorm_linear(x, gamma, beta, w, b))
    assert out_bf16.shape == (batch, seq, dim)
    assert jnp.allclose(out_bf16, ref, atol=3e-2, rtol=3e-2)

    # 3) Multi-step grid with a remainder edge block (exercises Pallas
    #    OOB-masked writes — no wrapper pad/slice any more).
    x_big = jax.random.normal(kx2, (2, 200, dim), dtype=jnp.float32)
    ref_big = prenorm_reference(x_big, gamma, beta, w, b)
    out_big = jax.block_until_ready(
        prenorm_linear(x_big, gamma, beta, w, b, tile_m=128, mxu_dtype=None))
    assert out_big.shape == (2, 200, dim)
    assert jnp.allclose(out_big, ref_big, atol=1e-4, rtol=1e-4)

    # 4) Auto tile_m (budget-derived, single grid step) on the remainder case.
    out_auto = jax.block_until_ready(
        prenorm_linear(x_big, gamma, beta, w, b, mxu_dtype=None))
    assert jnp.allclose(out_auto, ref_big, atol=1e-4, rtol=1e-4)

    print("KERNEL_OK")
</pallas_src>

<mosaic_0001>
module attributes {stable_mosaic.version = 11 : i64} {
  func.func @prenorm_kernel(%arg0: i32, %arg1: memref<16x128xf32, #tpu.memory_space<vmem>>, %arg2: memref<1x128xf32, #tpu.memory_space<vmem>>, %arg3: memref<1x128xf32, #tpu.memory_space<vmem>>, %arg4: memref<128x128xf32, #tpu.memory_space<vmem>>, %arg5: memref<1x128xf32, #tpu.memory_space<vmem>>, %arg6: memref<16x128xf32, #tpu.memory_space<vmem>>) attributes {dimension_semantics = [#tpu.dimension_semantics<parallel>], iteration_bounds = array<i64: 1>, scalar_prefetch = 0 : i64, scratch_operands = 0 : i64, tpu.core_type = #tpu.core_type<tc>, window_params = [{transform_indices = @transform_0, window_bounds = array<i64: 16, 128>}, {pipeline_mode = #tpu.pipeline_mode<synchronous>, transform_indices = @transform_1, window_bounds = array<i64: 1, 128>}, {pipeline_mode = #tpu.pipeline_mode<synchronous>, transform_indices = @transform_2, window_bounds = array<i64: 1, 128>}, {pipeline_mode = #tpu.pipeline_mode<synchronous>, transform_indices = @transform_3, window_bounds = array<i64: 128, 128>}, {pipeline_mode = #tpu.pipeline_mode<synchronous>, transform_indices = @transform_4, window_bounds = array<i64: 1, 128>}, {transform_indices = @transform_5, window_bounds = array<i64: 16, 128>}]} {
    %c0 = arith.constant 0 : index
    %c0_0 = arith.constant 0 : index
    %0 = vector.load %arg1[%c0, %c0_0] : memref<16x128xf32, #tpu.memory_space<vmem>>, vector<16x128xf32>
    %cst = arith.constant dense<0.000000e+00> : vector<16xf32>
    %1 = vector.multi_reduction <add>, %0, %cst [1] : vector<16x128xf32> to vector<16xf32>
    %2 = vector.shape_cast %1 : vector<16xf32> to vector<16x1xf32>
    %cst_1 = arith.constant 7.812500e-03 : f32
    %3 = vector.broadcast %cst_1 : f32 to vector<16x1xf32>
    %4 = arith.mulf %2, %3 : vector<16x1xf32>
    %5 = vector.broadcast %4 : vector<16x1xf32> to vector<16x128xf32>
    %6 = arith.subf %0, %5 : vector<16x128xf32>
    %7 = arith.mulf %6, %6 : vector<16x128xf32>
    %cst_2 = arith.constant dense<0.000000e+00> : vector<16xf32>
    %8 = vector.multi_reduction <add>, %7, %cst_2 [1] : vector<16x128xf32> to vector<16xf32>
    %9 = vector.shape_cast %8 : vector<16xf32> to vector<16x1xf32>
    %cst_3 = arith.constant 7.812500e-03 : f32
    %10 = vector.broadcast %cst_3 : f32 to vector<16x1xf32>
    %11 = arith.mulf %9, %10 : vector<16x1xf32>
    %cst_4 = arith.constant 9.99999974E-6 : f32
    %12 = vector.broadcast %cst_4 : f32 to vector<16x1xf32>
    %13 = arith.addf %11, %12 : vector<16x1xf32>
    %14 = math.rsqrt %13 : vector<16x1xf32>
    %c0_5 = arith.constant 0 : index
    %c0_6 = arith.constant 0 : index
    %15 = vector.load %arg2[%c0_5, %c0_6] : memref<1x128xf32, #tpu.memory_space<vmem>>, vector<1x128xf32>
    %c0_7 = arith.constant 0 : index
    %c0_8 = arith.constant 0 : index
    %16 = vector.load %arg3[%c0_7, %c0_8] : memref<1x128xf32, #tpu.memory_space<vmem>>, vector<1x128xf32>
    %17 = vector.broadcast %14 : vector<16x1xf32> to vector<16x128xf32>
    %18 = arith.mulf %6, %17 : vector<16x128xf32>
    %19 = vector.broadcast %15 : vector<1x128xf32> to vector<16x128xf32>
    %20 = arith.mulf %18, %19 : vector<16x128xf32>
    %21 = vector.broadcast %16 : vector<1x128xf32> to vector<16x128xf32>
    %22 = arith.addf %20, %21 : vector<16x128xf32>
    %c0_9 = arith.constant 0 : index
    %c0_10 = arith.constant 0 : index
    %23 = vector.load %arg4[%c0_9, %c0_10] : memref<128x128xf32, #tpu.memory_space<vmem>>, vector<128x128xf32>
    %cst_11 = arith.constant dense<0.000000e+00> : vector<16x128xf32>
    %24 = tpu.matmul %22, %23, %cst_11 {dimension_numbers = #tpu.dot_dimension_numbers<[1], [0], [0], [1], [0, 0, 1, 1], [], []>} : vector<16x128xf32>, vector<128x128xf32>, vector<16x128xf32> -> vector<16x128xf32>
    %c0_12 = arith.constant 0 : index
    %c0_13 = arith.constant 0 : index
    %25 = vector.load %arg5[%c0_12, %c0_13] : memref<1x128xf32, #tpu.memory_space<vmem>>, vector<1x128xf32>
    %26 = vector.broadcast %25 : vector<1x128xf32> to vector<16x128xf32>
    %27 = arith.addf %24, %26 : vector<16x128xf32>
    %c0_14 = arith.constant 0 : index
    %c0_15 = arith.constant 0 : index
    %28 = vector.load %arg6[%c0_14, %c0_15] : memref<16x128xf32, #tpu.memory_space<vmem>>, vector<16x128xf32>
    tpu.vector_store %arg6[%c0_14, %c0_15], %27 {strides = array<i32>} : memref<16x128xf32, #tpu.memory_space<vmem>>, vector<16x128xf32>,
    return
  }
  func.func @transform_0(%arg0: i32) -> (i32, i32) {
    %c0_i32 = arith.constant 0 : i32
    %c0_i32_0 = arith.constant 0 : i32
    return %arg0, %c0_i32 : i32, i32
  }
  func.func @transform_1(%arg0: i32) -> (i32, i32) {
    %c0_i32 = arith.constant 0 : i32
    %c0_i32_0 = arith.constant 0 : i32
    %c0_i32_1 = arith.constant 0 : i32
    return %c0_i32, %c0_i32_0 : i32, i32
  }
  func.func @transform_2(%arg0: i32) -> (i32, i32) {
    %c0_i32 = arith.constant 0 : i32
    %c0_i32_0 = arith.constant 0 : i32
    %c0_i32_1 = arith.constant 0 : i32
    return %c0_i32, %c0_i32_0 : i32, i32
  }
  func.func @transform_3(%arg0: i32) -> (i32, i32) {
    %c0_i32 = arith.constant 0 : i32
    %c0_i32_0 = arith.constant 0 : i32
    %c0_i32_1 = arith.constant 0 : i32
    return %c0_i32, %c0_i32_0 : i32, i32
  }
  func.func @transform_4(%arg0: i32) -> (i32, i32) {
    %c0_i32 = arith.constant 0 : i32
    %c0_i32_0 = arith.constant 0 : i32
    %c0_i32_1 = arith.constant 0 : i32
    return %c0_i32, %c0_i32_0 : i32, i32
  }
  func.func @transform_5(%arg0: i32) -> (i32, i32) {
    %c0_i32 = arith.constant 0 : i32
    %c0_i32_0 = arith.constant 0 : i32
    return %arg0, %c0_i32 : i32, i32
  }
}

</mosaic_0001>

<llo_original>
// kernel: tpu_custom_call.1
$region0: #{tpu_custom_call.1}
  #allocation0 [shape = 'u32[]', space=smem, size = 0x4, offset = 0x4, fixed_abs, tag = 'smem constant byte address 0x4 - core index']
  #allocation1 [shape = 'u32[144,128]{1,0:T(1,128)}', space=vmem, size = 0x12000, scoped, tag = 'internal scratch']
  %s0 = inlined_call_operand.hbm [shape: f32[16,128], index: 0, kind: input, shape index: {}]
  %s1 = inlined_call_operand.vmem [shape: f32[1,128], index: 1, kind: input, shape index: {}]
  %s2 = inlined_call_operand.vmem [shape: f32[1,128], index: 2, kind: input, shape index: {}]
  %s3 = inlined_call_operand.hbm [shape: f32[128,128], index: 3, kind: input, shape index: {}]
  %s4 = inlined_call_operand.vmem [shape: f32[1,128], index: 4, kind: input, shape index: {}]
  %s5 = inlined_call_operand.hbm [shape: f32[16,128], index: 5, kind: output, shape index: {}]
  %s6 = sld [smem:[#allocation0]]
  $region38: #{tpu_custom_call.1} parent=0
    _
  %s8 = ssub.s32 1, %s6
  %s9 = scalar_select 0, %s8, %s6
  $region1: #{tpu_custom_call.1} parent=0
    #allocation2 [shape = 'u8[8192]{0}', space=vmem, size = 0x2000, scoped, tag = 'input window, operand 0, single buffered']
    #allocation3 [shape = 's32[1]{0}', space=sflag, size = 0x4, scoped, tag = 'scoped memory for tpu_custom_call.1']
    #allocation4 [shape = 's32[1]{0}', space=sflag, size = 0x4, scoped, tag = 'scoped memory for tpu_custom_call.1']
    #allocation5 [shape = 'u8[65536]{0}', space=vmem, size = 0x10000, scoped, tag = 'input window, operand 3, single buffered']
    #allocation6 [shape = 's32[1]{0}', space=sflag, size = 0x4, scoped, tag = 'scoped memory for tpu_custom_call.1']
    #allocation7 [shape = 'u8[8192]{0}', space=vmem, size = 0x2000, scoped, tag = 'output window, operand 0, single buffered']
    %10 = vsyncpa [#allocation3], 0
    %11 = vsyncpa [#allocation6], 0
    %12 = vsyncpa [#allocation4], 0
    // Predicated region
    $region2: #{tpu_custom_call.1} parent=1 // pred_check
      _
    $region3: #{tpu_custom_call.1} parent=1 // pred_check_branch
      %14 = sbr.rel (0) target = $region5
    $region4: #{tpu_custom_call.1} parent=1 // pred_region
      %s16 = ssub.s32 256, 256
      %17 = vsyncadd [#allocation3], %s16
      %s18 = sshll.u32 [#allocation2], 4
      %s19 = int_to_ptr.vmem [resolvable:$true] %s18
      %24 = dma.hbm_to_vmem [thread:$0]  %s0, 256, %s19, [#allocation3], 128, 128, 8
    $region5: #{tpu_custom_call.1} parent=1 // pred_fallthru
      _
    // Predicated region
    $region6: #{tpu_custom_call.1} parent=1 // pred_check
      _
    $region7: #{tpu_custom_call.1} parent=1 // pred_check_branch
      %26 = sbr.rel (0) target = $region9
    $region8: #{tpu_custom_call.1} parent=1 // pred_region
      _
    $region9: #{tpu_custom_call.1} parent=1 // pred_fallthru
      _
    // Predicated region
    $region10: #{tpu_custom_call.1} parent=1 // pred_check
      _
    $region11: #{tpu_custom_call.1} parent=1 // pred_check_branch
      %28 = sbr.rel (0) target = $region13
    $region12: #{tpu_custom_call.1} parent=1 // pred_region
      _
    $region13: #{tpu_custom_call.1} parent=1 // pred_fallthru
      _
    // Predicated region
    $region14: #{tpu_custom_call.1} parent=1 // pred_check
      _
    $region15: #{tpu_custom_call.1} parent=1 // pred_check_branch
      %30 = sbr.rel (0) target = $region17
    $region16: #{tpu_custom_call.1} parent=1 // pred_region
      %s32 = ssub.s32 2048, 2048
      %33 = vsyncadd [#allocation6], %s32
      %s34 = sshll.u32 [#allocation5], 4
      %s35 = int_to_ptr.vmem [resolvable:$true] %s34
      %40 = dma.hbm_to_vmem [thread:$0]  %s3, 2048, %s35, [#allocation6], 128, 128, 8
    $region17: #{tpu_custom_call.1} parent=1 // pred_fallthru
      _
    // Predicated region
    $region18: #{tpu_custom_call.1} parent=1 // pred_check
      _
    $region19: #{tpu_custom_call.1} parent=1 // pred_check_branch
      %42 = sbr.rel (0) target = $region21
    $region20: #{tpu_custom_call.1} parent=1 // pred_region
      _
    $region21: #{tpu_custom_call.1} parent=1 // pred_fallthru
      _
    // Predicated region
    $region22: #{tpu_custom_call.1} parent=1 // pred_check
      _
    $region23: #{tpu_custom_call.1} parent=1 // pred_check_branch
      %44 = sbr.rel (0) target = $region25
    $region24: #{tpu_custom_call.1} parent=1 // pred_region
      %45 = dma.done [#allocation3], 256
    $region25: #{tpu_custom_call.1} parent=1 // pred_fallthru
      _
    // Predicated region
    $region26: #{tpu_custom_call.1} parent=1 // pred_check
      _
    $region27: #{tpu_custom_call.1} parent=1 // pred_check_branch
      %47 = sbr.rel (0) target = $region29
    $region28: #{tpu_custom_call.1} parent=1 // pred_region
      %48 = dma.done [#allocation6], 2048
    $region29: #{tpu_custom_call.1} parent=1 // pred_fallthru
      _
    %v49 = vld [vmem:[#allocation2] sm:$0xff]
    %v50 = vld [vmem:[#allocation2 + $0x8] sm:$0xff]
    %51 = vadd.xlane.f32.xlu0 %v49
    %v52 = vpop.xlane.xlu0 %51
    %53 = vadd.xlane.f32.xlu0 %v50
    %v54 = vpop.xlane.xlu0 %53
    %v55 = vmul.f32 %v52, 0.0078125
    %v56 = vmul.f32 %v54, 0.0078125
    %v57 = vsub.f32 %v49, %v55
    %v58 = vsub.f32 %v50, %v56
    %v59 = vmul.f32 %v57, %v57
    %v60 = vmul.f32 %v58, %v58
    %61 = vadd.xlane.f32.xlu0 %v59
    %v62 = vpop.xlane.xlu0 %61
    %63 = vadd.xlane.f32.xlu0 %v60
    %v64 = vpop.xlane.xlu0 %63
    %v65 = vmul.f32 %v62, 0.0078125
    %v66 = vmul.f32 %v64, 0.0078125
    %v67 = vadd.f32 %v65, 1e-05
    %v68 = vadd.f32 %v66, 1e-05
    %v69 = vrsqrt.pop %v67
    %v70 = vrsqrt.pop %v68
    %v71 = vld [vmem:[%s1] sm:$0x1]
    %v72 = vld [vmem:[%s2] sm:$0x1]
    %v73 = vmul.f32 %v57, %v69
    %v74 = vmul.f32 %v58, %v70
    %v76 = vlaneseq
    %v77 = vshrl.u32 %v76, 7
    %v78 = vsub.s32 0, %v77
    %v79 = vrot.slane %v71, %v78
    %v81 = vmul.f32 %v73, %v79
    %v82 = vmul.f32 %v74, %v79
    %v84 = vlaneseq
    %v85 = vshrl.u32 %v84, 7
    %v86 = vsub.s32 0, %v85
    %v87 = vrot.slane %v72, %v86
    %v89 = vadd.f32 %v81, %v87
    %v90 = vadd.f32 %v82, %v87
    %v91 = vld [vmem:[#allocation5] sm:$0xff]
    %v92 = vld [vmem:[#allocation5 + $0x8] sm:$0xff]
    %v93 = vld [vmem:[#allocation5 + $0x10] sm:$0xff]
    %v94 = vld [vmem:[#allocation5 + $0x18] sm:$0xff]
    %v95 = vld [vmem:[#allocation5 + $0x20] sm:$0xff]
    %v96 = vld [vmem:[#allocation5 + $0x28] sm:$0xff]
    %v97 = vld [vmem:[#allocation5 + $0x30] sm:$0xff]
    %v98 = vld [vmem:[#allocation5 + $0x38] sm:$0xff]
    %v99 = vld [vmem:[#allocation5 + $0x40] sm:$0xff]
    %v100 = vld [vmem:[#allocation5 + $0x48] sm:$0xff]
    %v101 = vld [vmem:[#allocation5 + $0x50] sm:$0xff]
    %v102 = vld [vmem:[#allocation5 + $0x58] sm:$0xff]
    %v103 = vld [vmem:[#allocation5 + $0x60] sm:$0xff]
    %v104 = vld [vmem:[#allocation5 + $0x68] sm:$0xff]
    %v105 = vld [vmem:[#allocation5 + $0x70] sm:$0xff]
    %v106 = vld [vmem:[#allocation5 + $0x78] sm:$0xff]
    %v107 = vld [vmem:[%s4] sm:$0x1]
    %v109 = vlaneseq
    %v110 = vshrl.u32 %v109, 7
    %v111 = vsub.s32 0, %v110
    %v112 = vrot.slane %v107, %v111
    %114 = vmatprep.subr.mxu0 0.0
    %115 = vmatpush1.msra.mxu0 %v91
    %116 = vmatprep.subr.mxu0 0.0
    %117 = vmatpush1.msra.mxu0 %v92
    %118 = vmatprep.subr.mxu0 0.0
    %119 = vmatpush1.msra.mxu0 %v93
    %120 = vmatprep.subr.mxu0 0.0
    %121 = vmatpush1.msra.mxu0 %v94
    %122 = vmatprep.subr.mxu0 0.0
    %123 = vmatpush1.msra.mxu0 %v95
    %124 = vmatprep.subr.mxu0 0.0
    %125 = vmatpush1.msra.mxu0 %v96
    %126 = vmatprep.subr.mxu0 0.0
    %127 = vmatpush1.msra.mxu0 %v97
    %128 = vmatprep.subr.mxu0 0.0
    %129 = vmatpush1.msra.mxu0 %v98
    %130 = vmatprep.subr.mxu0 0.0
    %131 = vmatpush1.msra.mxu0 %v99
    %132 = vmatprep.subr.mxu0 0.0
    %133 = vmatpush1.msra.mxu0 %v100
    %134 = vmatprep.subr.mxu0 0.0
    %135 = vmatpush1.msra.mxu0 %v101
    %136 = vmatprep.subr.mxu0 0.0
    %137 = vmatpush1.msra.mxu0 %v102
    %138 = vmatprep.subr.mxu0 0.0
    %139 = vmatpush1.msra.mxu0 %v103
    %140 = vmatprep.subr.mxu0 0.0
    %141 = vmatpush1.msra.mxu0 %v104
    %142 = vmatprep.subr.mxu0 0.0
    %143 = vmatpush1.msra.mxu0 %v105
    %144 = vmatprep.subr.mxu0 0.0
    %145 = vmatpush1.msra.mxu0 %v106
    %146 = vmatprep.subr.mxu0 0.0
    %147 = vmatpush1.msra.mxu0 0.0
    %148 = vmatprep.subr.mxu0 0.0
    %149 = vmatpush1.msra.mxu0 0.0
    %150 = vmatprep.subr.mxu0 0.0
    %151 = vmatpush1.msra.mxu0 0.0
    %152 = vmatprep.subr.mxu0 0.0
    %153 = vmatpush1.msra.mxu0 0.0
    %154 = vmatprep.subr.mxu0 0.0
    %155 = vmatpush1.msra.mxu0 0.0
    %156 = vmatprep.subr.mxu0 0.0
    %157 = vmatpush1.msra.mxu0 0.0
    %158 = vmatprep.subr.mxu0 0.0
    %159 = vmatpush1.msra.mxu0 0.0
    %160 = vmatprep.subr.mxu0 0.0
    %161 = vmatpush1.msra.mxu0 0.0
    %162 = vmatprep.subr.mxu0 0.0
    %163 = vmatpush1.msra.mxu0 0.0
    %164 = vmatprep.subr.mxu0 0.0
    %165 = vmatpush1.msra.mxu0 0.0
    %166 = vmatprep.subr.mxu0 0.0
    %167 = vmatpush1.msra.mxu0 0.0
    %168 = vmatprep.subr.mxu0 0.0
    %169 = vmatpush1.msra.mxu0 0.0
    %170 = vmatprep.subr.mxu0 0.0
    %171 = vmatpush1.msra.mxu0 0.0
    %172 = vmatprep.subr.mxu0 0.0
    %173 = vmatpush1.msra.mxu0 0.0
    %174 = vmatprep.subr.mxu0 0.0
    %175 = vmatpush1.msra.mxu0 0.0
    %176 = vmatprep.subr.mxu0 0.0
    %177 = vmatpush1.msra.mxu0 0.0
    %178 = vmatprep.mubr.f32.mxu0 0.0
    %179 = vmatmul.mubr.f32.gmra.mrb[0].mxu0 %v89
    %v180 = vpop.f32.mrb[0].mxu0
    %v181 = vadd.f32 %v112, %v180
    %v182 = vpop.f32.mrb[0].mxu0
    %183 = vmatprep.mubr.f32.mxu0 0.0
    %184 = vmatmul.mubr.f32.gmra.mrb[0].mxu0 %v90
    %v185 = vpop.f32.mrb[0].mxu0
    %v186 = vadd.f32 %v112, %v185
    %v187 = vpop.f32.mrb[0].mxu0
    %188 = vdwg.mxu0
    %189 = vst [vmem:[#allocation7] sm:$0xff] %v181
    %190 = vst [vmem:[#allocation7 + $0x8] sm:$0xff] %v186
    // Predicated region
    $region30: #{tpu_custom_call.1} parent=1 // pred_check
      _
    $region31: #{tpu_custom_call.1} parent=1 // pred_check_branch
      %192 = sbr.rel (0) target = $region33
    $region32: #{tpu_custom_call.1} parent=1 // pred_region
      %s194 = ssub.s32 256, 256
      %195 = vsyncadd [#allocation4], %s194
      %s196 = sshll.u32 [#allocation7], 4
      %s197 = int_to_ptr.vmem [resolvable:$true] %s196
      %202 = dma.vmem_to_hbm [thread:$0]  %s197, 256, %s5, [#allocation4], 128, 128, 8
    $region33: #{tpu_custom_call.1} parent=1 // pred_fallthru
      _
    // Predicated region
    $region34: #{tpu_custom_call.1} parent=1 // pred_check
      _
    $region35: #{tpu_custom_call.1} parent=1 // pred_check_branch
      %204 = sbr.rel (0) target = $region37
    $region36: #{tpu_custom_call.1} parent=1 // pred_region
      %205 = dma.done [#allocation4], 256
    $region37: #{tpu_custom_call.1} parent=1 // pred_fallthru
      _
    %206 = vsyncpa [#allocation3], 1
    %207 = vsyncpa [#allocation6], 1
    %208 = vsyncpa [#allocation4], 1

</llo_original>
